<compile_context>
chip_gen: v7x
topology: tpu7x:2x2x1
jax: 0.10.0
libtpu: 0.0.40
codegen_flags: <defaults>
</compile_context>

<pallas_src>
import jax
import jax.numpy as jnp
import numpy as np
from jax.experimental import pallas as pl
from jax.experimental.pallas import tpu as pltpu


def _fourier_kernel(x_ref, omega_ref, amp_ref, phase_ref, o_ref):
    # x_ref:     (1, TN)     f32 -- input samples for this tile (lane-dense)
    # omega_ref: (H_pad, 1)  f32 -- 2*pi*f0*m_k       (0 in padded rows)
    # amp_ref:   (H_pad, 1)  f32 -- R_k = sqrt(wc_k^2 + ws_k^2)  (0 in padded rows)
    # phase_ref: (H_pad, 1)  f32 -- phi_k = atan2(ws_k, wc_k)
    # o_ref:     (1, TN)     f32
    x = x_ref[...]                                          # (1, TN)
    theta = omega_ref[...] * x - phase_ref[...]             # (H_pad, TN)   VPU
    contrib = amp_ref[...] * jnp.cos(theta)                 # EUP (cos) + VPU
    o_ref[...] = jnp.sum(contrib, axis=0, keepdims=True)    # sublane reduce -> (1, TN)


def _fold_constants(weight, base_frequency: float, harmonics: int):
    """Fold fc1 weights into per-harmonic (omega, amplitude, phase) sublane columns."""
    h = harmonics
    fac = np.ones((h,), dtype=np.float32)
    for i in range(2, h):
        fac[i - 1] *= i                     # fac = [1, 2, ..., h-1, 1]  (m_0 = m_{h-1} = 1)

    w = weight.astype(jnp.float32).reshape(2 * h)
    w_cos_full, w_sin_full = w[:h], w[h:]
    if h >= 2:
        # Duplicated harmonic: m_0 == m_{h-1} == 1 -> merge last column into the first.
        w_cos = w_cos_full[: h - 1].at[0].add(w_cos_full[h - 1])
        w_sin = w_sin_full[: h - 1].at[0].add(w_sin_full[h - 1])
        fac = fac[: h - 1]
    else:
        w_cos, w_sin = w_cos_full, w_sin_full
    h_eff = fac.shape[0]

    # Amplitude/phase fold: wc*cos(t) + ws*sin(t) == R*cos(t - phi)  -> no sin in-kernel.
    amp = jnp.sqrt(w_cos * w_cos + w_sin * w_sin)
    phase = jnp.arctan2(w_sin, w_cos)
    omega = jnp.asarray(fac * np.float32(2.0 * np.pi * base_frequency))

    # Pad harmonics up to a multiple of 8 sublanes with zero-amplitude rows.
    h_pad = max(8, ((h_eff + 7) // 8) * 8)
    pad = h_pad - h_eff
    omega = jnp.pad(omega, (0, pad)).reshape(h_pad, 1)
    amp = jnp.pad(amp, (0, pad)).reshape(h_pad, 1)
    phase = jnp.pad(phase, (0, pad)).reshape(h_pad, 1)
    return omega, amp, phase, h_pad


def _pick_tile(n_pad: int, h_pad: int, max_tile: int = 16384) -> int:
    """Largest lane-multiple tile dividing n_pad, under an H-aware VMEM budget."""
    # Keep ~4 live (h_pad, tile) f32 slabs under ~8 MiB so large tiles remain portable
    # to v7x (64 MiB physical / 32 MiB scoped VMEM); v5e/v6e have more headroom.
    vmem_cap = (8 * 1024 * 1024) // (4 * 4 * h_pad)
    limit = max(128, min(max_tile, (vmem_cap // 128) * 128, n_pad))
    t = (limit // 128) * 128
    while n_pad % t:        # n_pad is a multiple of 128, so this terminates (t = 128 divides)
        t -= 128
    return t


def fourier_series_net(x_values, weight, base_frequency: float, harmonics: int,
                       *, tile_n: int | None = None):
    """x_values: (N,) f32; weight: (1, 2H) f32.  Returns (N, 1) f32."""
    n = x_values.shape[0]
    omega, amp, phase, h_pad = _fold_constants(weight, base_frequency, harmonics)

    # Lane-major input (1, N).  Pad only when N is not already lane-aligned, so the
    # aligned case adds zero extra HBM traffic (kernel stays at ~8 B/sample).
    n_pad = max(128, ((n + 127) // 128) * 128)
    x_row = x_values.astype(jnp.float32).reshape(1, n)
    if n_pad != n:
        x_row = jnp.pad(x_row, ((0, 0), (0, n_pad - n)))

    if tile_n is None:
        tile_n = _pick_tile(n_pad, h_pad)
    else:
        # Validate / adjust a user-supplied tile instead of asserting.
        tile_n = max(128, (min(tile_n, n_pad) // 128) * 128)
        while n_pad % tile_n:
            tile_n -= 128

    cost = pl.CostEstimate(
        flops=int(4 * h_pad * n_pad),          # mul, sub, mul, add per (harmonic, sample)
        transcendentals=int(h_pad * n_pad),    # one cos per (harmonic, sample)
        bytes_accessed=int(8 * n_pad + 12 * h_pad),
    )

    out_row = pl.pallas_call(
        _fourier_kernel,
        out_shape=jax.ShapeDtypeStruct((1, n_pad), jnp.float32),
        grid_spec=pltpu.PrefetchScalarGridSpec(
            num_scalar_prefetch=0,
            grid=(n_pad // tile_n,),
            in_specs=[
                pl.BlockSpec((1, tile_n), lambda i: (0, i)),   # x tile (contiguous DMA)
                pl.BlockSpec((h_pad, 1), lambda i: (0, 0)),    # omega   (stays resident)
                pl.BlockSpec((h_pad, 1), lambda i: (0, 0)),    # amplitude
                pl.BlockSpec((h_pad, 1), lambda i: (0, 0)),    # phase
            ],
            out_specs=pl.BlockSpec((1, tile_n), lambda i: (0, i)),  # lane-dense stores
        ),
        compiler_params=pltpu.CompilerParams(
            # TODO(synk): on v7x, pltpu.CORE_PARALLEL (or pl.core_map over a tensorcore
            # mesh) on this axis is what actually shards a large-N grid across both TCs.
            dimension_semantics=("parallel",),
            vmem_limit_bytes=32 * 1024 * 1024,
        ),
        cost_estimate=cost,
    )(x_row, omega, amp, phase)

    return out_row[0, :n].reshape(n, 1)


def _reference(x_values, weight, base_frequency: float, harmonics: int):
    """Pure-JAX reference mirroring the PyTorch forward exactly."""
    fac = np.ones((harmonics,), dtype=np.float32)
    for i in range(2, harmonics):
        fac[i - 1] *= i
    freqs = (x_values.reshape(-1, 1).astype(jnp.float32)
             * jnp.asarray(fac) * (2.0 * np.pi * base_frequency))
    feats = jnp.concatenate([jnp.cos(freqs), jnp.sin(freqs)], axis=1)
    return feats @ weight.astype(jnp.float32).T


if __name__ == "__main__":
    base_frequency = 0.5
    harmonics = 8            # -> fc1 in_features = 16
    n = 256                  # regression samples (lane-aligned -> no pad path)

    key = jax.random.PRNGKey(0)
    kx, kw = jax.random.split(key)

    # Deterministic synthetic input and fc1 weight (nn.Linear-style uniform init).
    x_values = jax.random.uniform(kx, (n,), dtype=jnp.float32, minval=-2.0, maxval=2.0)
    bound = 1.0 / np.sqrt(2 * harmonics)
    weight = jax.random.uniform(kw, (1, 2 * harmonics), dtype=jnp.float32,
                                minval=-bound, maxval=bound)

    out = fourier_series_net(x_values, weight, base_frequency, harmonics)
    out = jax.block_until_ready(out)

    ref = _reference(x_values, weight, base_frequency, harmonics)
    assert out.shape == (n, 1), out.shape
    # Amplitude/phase fold + harmonic dedup change the f32 rounding order by a few ULP,
    # so compare with a slightly relaxed (but still tight) tolerance.
    np.testing.assert_allclose(np.asarray(out), np.asarray(ref), rtol=1e-4, atol=1e-5)

    print("KERNEL_OK")
</pallas_src>

<mosaic_0001>
module attributes {stable_mosaic.version = 11 : i64} {
  func.func @_fourier_kernel(%arg0: i32, %arg1: memref<1x256xf32, #tpu.memory_space<vmem>>, %arg2: memref<8x1xf32, #tpu.memory_space<vmem>>, %arg3: memref<8x1xf32, #tpu.memory_space<vmem>>, %arg4: memref<8x1xf32, #tpu.memory_space<vmem>>, %arg5: memref<1x256xf32, #tpu.memory_space<vmem>>) attributes {dimension_semantics = [#tpu.dimension_semantics<parallel>], iteration_bounds = array<i64: 1>, scalar_prefetch = 0 : i64, scratch_operands = 0 : i64, tpu.core_type = #tpu.core_type<tc>, window_params = [{transform_indices = @transform_0, window_bounds = array<i64: 1, 256>}, {pipeline_mode = #tpu.pipeline_mode<synchronous>, transform_indices = @transform_1, window_bounds = array<i64: 8, 1>}, {pipeline_mode = #tpu.pipeline_mode<synchronous>, transform_indices = @transform_2, window_bounds = array<i64: 8, 1>}, {pipeline_mode = #tpu.pipeline_mode<synchronous>, transform_indices = @transform_3, window_bounds = array<i64: 8, 1>}, {transform_indices = @transform_4, window_bounds = array<i64: 1, 256>}]} {
    %c0 = arith.constant 0 : index
    %c0_0 = arith.constant 0 : index
    %0 = vector.load %arg1[%c0, %c0_0] : memref<1x256xf32, #tpu.memory_space<vmem>>, vector<1x256xf32>
    %c0_1 = arith.constant 0 : index
    %c0_2 = arith.constant 0 : index
    %1 = vector.load %arg2[%c0_1, %c0_2] : memref<8x1xf32, #tpu.memory_space<vmem>>, vector<8x1xf32>
    %2 = vector.broadcast %1 : vector<8x1xf32> to vector<8x256xf32>
    %3 = vector.broadcast %0 : vector<1x256xf32> to vector<8x256xf32>
    %4 = arith.mulf %2, %3 : vector<8x256xf32>
    %c0_3 = arith.constant 0 : index
    %c0_4 = arith.constant 0 : index
    %5 = vector.load %arg4[%c0_3, %c0_4] : memref<8x1xf32, #tpu.memory_space<vmem>>, vector<8x1xf32>
    %6 = vector.broadcast %5 : vector<8x1xf32> to vector<8x256xf32>
    %7 = arith.subf %4, %6 : vector<8x256xf32>
    %c0_5 = arith.constant 0 : index
    %c0_6 = arith.constant 0 : index
    %8 = vector.load %arg3[%c0_5, %c0_6] : memref<8x1xf32, #tpu.memory_space<vmem>>, vector<8x1xf32>
    %9 = math.cos %7 : vector<8x256xf32>
    %10 = vector.broadcast %8 : vector<8x1xf32> to vector<8x256xf32>
    %11 = arith.mulf %10, %9 : vector<8x256xf32>
    %cst = arith.constant dense<0.000000e+00> : vector<256xf32>
    %12 = vector.multi_reduction <add>, %11, %cst [0] : vector<8x256xf32> to vector<256xf32>
    %13 = vector.shape_cast %12 : vector<256xf32> to vector<1x256xf32>
    %c0_7 = arith.constant 0 : index
    %c0_8 = arith.constant 0 : index
    %14 = vector.load %arg5[%c0_7, %c0_8] : memref<1x256xf32, #tpu.memory_space<vmem>>, vector<1x256xf32>
    tpu.vector_store %arg5[%c0_7, %c0_8], %13 {strides = array<i32>} : memref<1x256xf32, #tpu.memory_space<vmem>>, vector<1x256xf32>,
    return
  }
  func.func @transform_0(%arg0: i32) -> (i32, i32) {
    %c0_i32 = arith.constant 0 : i32
    %c0_i32_0 = arith.constant 0 : i32
    return %c0_i32, %arg0 : i32, i32
  }
  func.func @transform_1(%arg0: i32) -> (i32, i32) {
    %c0_i32 = arith.constant 0 : i32
    %c0_i32_0 = arith.constant 0 : i32
    %c0_i32_1 = arith.constant 0 : i32
    return %c0_i32, %c0_i32_0 : i32, i32
  }
  func.func @transform_2(%arg0: i32) -> (i32, i32) {
    %c0_i32 = arith.constant 0 : i32
    %c0_i32_0 = arith.constant 0 : i32
    %c0_i32_1 = arith.constant 0 : i32
    return %c0_i32, %c0_i32_0 : i32, i32
  }
  func.func @transform_3(%arg0: i32) -> (i32, i32) {
    %c0_i32 = arith.constant 0 : i32
    %c0_i32_0 = arith.constant 0 : i32
    %c0_i32_1 = arith.constant 0 : i32
    return %c0_i32, %c0_i32_0 : i32, i32
  }
  func.func @transform_4(%arg0: i32) -> (i32, i32) {
    %c0_i32 = arith.constant 0 : i32
    %c0_i32_0 = arith.constant 0 : i32
    return %c0_i32, %arg0 : i32, i32
  }
}

</mosaic_0001>

<llo_original>
// kernel: tpu_custom_call.1
$region0: #{tpu_custom_call.1}
  #allocation0 [shape = 'u32[]', space=smem, size = 0x4, offset = 0x4, fixed_abs, tag = 'smem constant byte address 0x4 - core index']
  #allocation1 [shape = 'u32[144,128]{1,0:T(1,128)}', space=vmem, size = 0x12000, scoped, tag = 'internal scratch']
  %s0 = inlined_call_operand.vmem [shape: f32[1,256], index: 0, kind: input, shape index: {}]
  %s1 = inlined_call_operand.vmem [shape: f32[8,1], index: 1, kind: input, shape index: {}]
  %s2 = inlined_call_operand.vmem [shape: f32[8,1], index: 2, kind: input, shape index: {}]
  %s3 = inlined_call_operand.vmem [shape: f32[8,1], index: 3, kind: input, shape index: {}]
  %s4 = inlined_call_operand.hbm [shape: f32[1,256], index: 4, kind: output, shape index: {}]
  %s5 = sld [smem:[#allocation0]]
  $region26: #{tpu_custom_call.1} parent=0
    _
  %s7 = ssub.s32 1, %s5
  %s8 = scalar_select 0, %s7, %s5
  $region1: #{tpu_custom_call.1} parent=0
    #allocation2 [shape = 'u8[1024]{0}', space=vmem, size = 0x400, scoped, tag = 'output window, operand 0, single buffered']
    #allocation3 [shape = 's32[1]{0}', space=sflag, size = 0x4, scoped, tag = 'scoped memory for tpu_custom_call.1']
    %9 = vsyncpa [#allocation3], 0
    // Predicated region
    $region2: #{tpu_custom_call.1} parent=1 // pred_check
      _
    $region3: #{tpu_custom_call.1} parent=1 // pred_check_branch
      %11 = sbr.rel (0) target = $region5
    $region4: #{tpu_custom_call.1} parent=1 // pred_region
      _
    $region5: #{tpu_custom_call.1} parent=1 // pred_fallthru
      _
    // Predicated region
    $region6: #{tpu_custom_call.1} parent=1 // pred_check
      _
    $region7: #{tpu_custom_call.1} parent=1 // pred_check_branch
      %13 = sbr.rel (0) target = $region9
    $region8: #{tpu_custom_call.1} parent=1 // pred_region
      _
    $region9: #{tpu_custom_call.1} parent=1 // pred_fallthru
      _
    // Predicated region
    $region10: #{tpu_custom_call.1} parent=1 // pred_check
      _
    $region11: #{tpu_custom_call.1} parent=1 // pred_check_branch
      %15 = sbr.rel (0) target = $region13
    $region12: #{tpu_custom_call.1} parent=1 // pred_region
      _
    $region13: #{tpu_custom_call.1} parent=1 // pred_fallthru
      _
    // Predicated region
    $region14: #{tpu_custom_call.1} parent=1 // pred_check
      _
    $region15: #{tpu_custom_call.1} parent=1 // pred_check_branch
      %17 = sbr.rel (0) target = $region17
    $region16: #{tpu_custom_call.1} parent=1 // pred_region
      _
    $region17: #{tpu_custom_call.1} parent=1 // pred_fallthru
      _
    %v18 = vld [vmem:[%s0] sm:$0x3]
    %v19 = vld [vmem:[%s1] sm:$0xff]
    %21 = vset.pattern.permute.xlu0 0
    %22 = vperm.xlu0 %21, %v19
    %v23 = vpop.permute.xlu0 %22
    %v26 = vlaneseq
    %v27 = vshrl.u32 %v26, 7
    %v28 = vsub.s32 0, %v27
    %v29 = vrot.slane %v18, %v28
    %v30 = vlaneseq
    %v31 = vshrl.u32 %v30, 7
    %v32 = vsub.s32 1, %v31
    %v33 = vrot.slane %v18, %v32
    %v36 = vmul.f32 %v23, %v29
    %v37 = vmul.f32 %v23, %v33
    %v38 = vld [vmem:[%s3] sm:$0xff]
    %40 = vset.pattern.permute.xlu0 0
    %41 = vperm.xlu0 %40, %v38
    %v42 = vpop.permute.xlu0 %41
    %v44 = vsub.f32 %v36, %v42
    %v45 = vsub.f32 %v37, %v42
    %v46 = vld [vmem:[%s2] sm:$0xff]
    %v47 = vand.u32 2147483647, %v44
    %vm48 = vcmp.le.f32.partialorder %v47, 0.7853982
    %vm49 = vcmp.lt.s32.totalorder %v44, 0
    %v50 = vand.u32 %v44, 2139095040
    %v51 = vshrl.u32 %v50, 23
    %v52 = vsub.s32 %v51, 127
    %v53 = vand.u32 2147483647, %v44
    %v54 = vand.u32 %v53, 8388607
    %v55 = vor.u32 %v54, 8388608
    %v56 = vsub.s32 0, %v55
    %v57 = vadd.s32 %v52, 1
    %vm58 = vcmp.gt.s32.totalorder %v57, 0
    %v59 = vsel %vm58, %v57, 0
    %v60 = vshrl.u32 %v59, 5
    %v61 = vand.u32 %v59, 31
    %v62 = vsub.s32 32, %v61
    %v63 = vshrl.u32 683565275, %v62
    %v64 = vshll.u32 683565275, %v61
    %v65 = vshrl.u32 2475754826, %v62
    %v66 = vor.u32 %v64, %v65
    %v67 = vshll.u32 2475754826, %v61
    %v68 = vshrl.u32 2131351028, %v62
    %v69 = vor.u32 %v67, %v68
    %v70 = vshll.u32 2131351028, %v61
    %v71 = vshrl.u32 2102212464, %v62
    %v72 = vor.u32 %v70, %v71
    %v73 = vshll.u32 2102212464, %v61
    %v74 = vshrl.u32 920167782, %v62
    %v75 = vor.u32 %v73, %v74
    %v76 = vshll.u32 920167782, %v61
    %v77 = vshrl.u32 1326507024, %v62
    %v78 = vor.u32 %v76, %v77
    %vm79 = vcmp.lt.s32.totalorder %v60, 1
    %vm80 = vcmp.lt.s32.totalorder %v60, 2
    %vm81 = vcmp.lt.s32.totalorder %v60, 3
    %vm82 = vcmp.lt.s32.totalorder %v60, 4
    %v83 = vsel %vm79, %v63, %v66
    %v84 = vsel %vm82, %v72, 2102212464
    %v85 = vsel %vm81, %v69, %v84
    %v86 = vsel %vm80, %v83, %v85
    %v87 = vsel %vm79, %v66, %v69
    %v88 = vsel %vm82, %v75, 920167782
    %v89 = vsel %vm81, %v72, %v88
    %v90 = vsel %vm80, %v87, %v89
    %v91 = vsel %vm79, %v69, %v72
    %v92 = vsel %vm82, %v78, 1326507024
    %v93 = vsel %vm81, %v75, %v92
    %v94 = vsel %vm80, %v91, %v93
    %v95 = vshll.u32 %v55, 8
    %v96 = vmul.u32.u64.compose %v95, %v94
    %v97 = vextract.low.u32 %v96
    %v98 = vextract.high.u32 %v96
    %v99 = vmul.u32.u64.compose %v95, %v90
    %v100 = vextract.low.u32 %v99
    %v101 = vextract.high.u32 %v99
    %v102 = vmul.u32 %v95, %v86
    %v103 = vadd.s32 %v98, %v100
    %vm104 = vc.u32 %v98, %v100
    %v105 = vadd.s32 %v101, 1
    %v106 = vsel %vm104, %v105, %v101
    %v107 = vadd.s32 %v102, %v106
    %v108 = vadd.s32 %v107, 536870912
    %v109 = vshrl.u32 %v108, 30
    %v110 = vshll.u32 %v109, 30
    %v111 = vsub.s32 %v107, %v110
    %vm112 = vcmp.lt.s32.totalorder %v111, 0
    %v113 = vsub.s32 0, %v111
    %v114 = vsel %vm112, %v113, %v111
    %v115 = vclz %v114
    %v116 = vsub.s32 %v115, 2
    %vm117 = vcmp.gt.s32.totalorder 0, %v116
    %v118 = vsel %vm117, 0, %v116
    %v119 = vsub.s32 32, %v118
    %v120 = vshll.u32 %v111, %v118
    %v121 = vshrl.u32 %v103, %v119
    %v122 = vor.u32 %v120, %v121
    %v123 = vsub.s32 4294967266, %v118
    %v124 = vadd.s32 %v123, 127
    %v125 = vshll.u32 %v124, 23
    %v126 = vor.u32 4788187, %v125
    %v127 = vand.u32 2147483647, %v126
    %v129 = vcvt.s32.f32 %v122
    %v130 = vmul.f32 %v129, %v127
    %v131 = vxor.u32 %v130, 2147483648
    %v132 = vsel %vm49, %v131, %v130
    %v133 = vsub.s32 4, %v109
    %v134 = vsel %vm49, %v133, %v109
    %v135 = vsel %vm48, %v44, %v132
    %v136 = vsel %vm48, 0, %v134
    %v137 = vcosq.f32.pop %v135
    %v138 = vsinq.f32.pop %v135
    %vm139 = vweird.f32 %v44
    %v140 = vand.u32 %v136, 3
    %vm141 = vcmp.lt.s32.totalorder %v140, 2
    %vm142 = vcmp.eq.s32.totalorder %v140, 0
    %v143 = vxor.u32 %v138, 2147483648
    %v144 = vsel %vm142, %v137, %v143
    %vm145 = vcmp.eq.s32.totalorder %v140, 2
    %v146 = vxor.u32 %v137, 2147483648
    %v147 = vsel %vm145, %v146, %v138
    %v148 = vsel %vm141, %v144, %v147
    %v149 = vsel %vm139, nan, %v148
    %v150 = vand.u32 2147483647, %v45
    %vm151 = vcmp.le.f32.partialorder %v150, 0.7853982
    %vm152 = vcmp.lt.s32.totalorder %v45, 0
    %v153 = vand.u32 %v45, 2139095040
    %v154 = vshrl.u32 %v153, 23
    %v155 = vsub.s32 %v154, 127
    %v156 = vand.u32 2147483647, %v45
    %v157 = vand.u32 %v156, 8388607
    %v158 = vor.u32 %v157, 8388608
    %v159 = vsub.s32 0, %v158
    %v160 = vadd.s32 %v155, 1
    %vm161 = vcmp.gt.s32.totalorder %v160, 0
    %v162 = vsel %vm161, %v160, 0
    %v163 = vshrl.u32 %v162, 5
    %v164 = vand.u32 %v162, 31
    %v165 = vsub.s32 32, %v164
    %v166 = vshrl.u32 683565275, %v165
    %v167 = vshll.u32 683565275, %v164
    %v168 = vshrl.u32 2475754826, %v165
    %v169 = vor.u32 %v167, %v168
    %v170 = vshll.u32 2475754826, %v164
    %v171 = vshrl.u32 2131351028, %v165
    %v172 = vor.u32 %v170, %v171
    %v173 = vshll.u32 2131351028, %v164
    %v174 = vshrl.u32 2102212464, %v165
    %v175 = vor.u32 %v173, %v174
    %v176 = vshll.u32 2102212464, %v164
    %v177 = vshrl.u32 920167782, %v165
    %v178 = vor.u32 %v176, %v177
    %v179 = vshll.u32 920167782, %v164
    %v180 = vshrl.u32 1326507024, %v165
    %v181 = vor.u32 %v179, %v180
    %vm182 = vcmp.lt.s32.totalorder %v163, 1
    %vm183 = vcmp.lt.s32.totalorder %v163, 2
    %vm184 = vcmp.lt.s32.totalorder %v163, 3
    %vm185 = vcmp.lt.s32.totalorder %v163, 4
    %v186 = vsel %vm182, %v166, %v169
    %v187 = vsel %vm185, %v175, 2102212464
    %v188 = vsel %vm184, %v172, %v187
    %v189 = vsel %vm183, %v186, %v188
    %v190 = vsel %vm182, %v169, %v172
    %v191 = vsel %vm185, %v178, 920167782
    %v192 = vsel %vm184, %v175, %v191
    %v193 = vsel %vm183, %v190, %v192
    %v194 = vsel %vm182, %v172, %v175
    %v195 = vsel %vm185, %v181, 1326507024
    %v196 = vsel %vm184, %v178, %v195
    %v197 = vsel %vm183, %v194, %v196
    %v198 = vshll.u32 %v158, 8
    %v199 = vmul.u32.u64.compose %v198, %v197
    %v200 = vextract.low.u32 %v199
    %v201 = vextract.high.u32 %v199
    %v202 = vmul.u32.u64.compose %v198, %v193
    %v203 = vextract.low.u32 %v202
    %v204 = vextract.high.u32 %v202
    %v205 = vmul.u32 %v198, %v189
    %v206 = vadd.s32 %v201, %v203
    %vm207 = vc.u32 %v201, %v203
    %v208 = vadd.s32 %v204, 1
    %v209 = vsel %vm207, %v208, %v204
    %v210 = vadd.s32 %v205, %v209
    %v211 = vadd.s32 %v210, 536870912
    %v212 = vshrl.u32 %v211, 30
    %v213 = vshll.u32 %v212, 30
    %v214 = vsub.s32 %v210, %v213
    %vm215 = vcmp.lt.s32.totalorder %v214, 0
    %v216 = vsub.s32 0, %v214
    %v217 = vsel %vm215, %v216, %v214
    %v218 = vclz %v217
    %v219 = vsub.s32 %v218, 2
    %vm220 = vcmp.gt.s32.totalorder 0, %v219
    %v221 = vsel %vm220, 0, %v219
    %v222 = vsub.s32 32, %v221
    %v223 = vshll.u32 %v214, %v221
    %v224 = vshrl.u32 %v206, %v222
    %v225 = vor.u32 %v223, %v224
    %v226 = vsub.s32 4294967266, %v221
    %v227 = vadd.s32 %v226, 127
    %v228 = vshll.u32 %v227, 23
    %v229 = vor.u32 4788187, %v228
    %v230 = vand.u32 2147483647, %v229
    %v232 = vcvt.s32.f32 %v225
    %v233 = vmul.f32 %v232, %v230
    %v234 = vxor.u32 %v233, 2147483648
    %v235 = vsel %vm152, %v234, %v233
    %v236 = vsub.s32 4, %v212
    %v237 = vsel %vm152, %v236, %v212
    %v238 = vsel %vm151, %v45, %v235
    %v239 = vsel %vm151, 0, %v237
    %v240 = vcosq.f32.pop %v238
    %v241 = vsinq.f32.pop %v238
    %vm242 = vweird.f32 %v45
    %v243 = vand.u32 %v239, 3
    %vm244 = vcmp.lt.s32.totalorder %v243, 2
    %vm245 = vcmp.eq.s32.totalorder %v243, 0
    %v246 = vxor.u32 %v241, 2147483648
    %v247 = vsel %vm245, %v240, %v246
    %vm248 = vcmp.eq.s32.totalorder %v243, 2
    %v249 = vxor.u32 %v240, 2147483648
    %v250 = vsel %vm248, %v249, %v241
    %v251 = vsel %vm244, %v247, %v250
    %v252 = vsel %vm242, nan, %v251
    %254 = vset.pattern.permute.xlu0 0
    %255 = vperm.xlu0 %254, %v46
    %v256 = vpop.permute.xlu0 %255
    %v258 = vmul.f32 %v256, %v149
    %v259 = vmul.f32 %v256, %v252
    %v260 = vrot.slane %v258, 4
    %v261 = vadd.f32 %v258, %v260
    %v262 = vrot.slane %v261, 2
    %v263 = vadd.f32 %v261, %v262
    %v264 = vrot.slane %v263, 1
    %v265 = vadd.f32 %v263, %v264
    %v266 = vrot.slane %v259, 4
    %v267 = vadd.f32 %v259, %v266
    %v268 = vrot.slane %v267, 2
    %v269 = vadd.f32 %v267, %v268
    %v270 = vrot.slane %v269, 1
    %v271 = vadd.f32 %v269, %v270
    %v274 = vcombine.low %v265, %v271
    %v276 = vunpack.c.l.s4 1966171168
    %v277 = vunpack.c.0.s8 %v276
    %v278 = vlaneseq
    %v279 = vshrl.u32 %v278, 7
    %v280 = vsub.s32 %v277, %v279
    %v281 = vrot.slane %v274, %v280
    %v283 = vunpack.c.l.s4 1966171168
    %v284 = vunpack.c.0.s8 %v283
    %v285 = vlaneseq
    %v286 = vshrl.u32 %v285, 7
    %v287 = vsub.s32 %v284, %v286
    %v288 = vrot.slane %v281, %v287
    %v290 = vlaneseq
    %vm291 = vcmp.ge.s32.totalorder %v290, 0
    %vm292 = vcmp.lt.s32.totalorder %v290, 256
    %vm293 = vmand %vm291, %vm292
    %294 = vst.msk [vmem:[#allocation2] sm:$0x3] %vm293, %v288
    // Predicated region
    $region18: #{tpu_custom_call.1} parent=1 // pred_check
      _
    $region19: #{tpu_custom_call.1} parent=1 // pred_check_branch
      %296 = sbr.rel (0) target = $region21
    $region20: #{tpu_custom_call.1} parent=1 // pred_region
      %s298 = ssub.s32 32, 32
      %299 = vsyncadd [#allocation3], %s298
      %s301 = sshll.u32 [#allocation2], 4
      %s302 = int_to_ptr.vmem [resolvable:$true] %s301
      %304 = dma.vmem_to_hbm [thread:$0]  %s302, 32, %s4, [#allocation3]
    $region21: #{tpu_custom_call.1} parent=1 // pred_fallthru
      _
    // Predicated region
    $region22: #{tpu_custom_call.1} parent=1 // pred_check
      _
    $region23: #{tpu_custom_call.1} parent=1 // pred_check_branch
      %306 = sbr.rel (0) target = $region25
    $region24: #{tpu_custom_call.1} parent=1 // pred_region
      %307 = dma.done [#allocation3], 32
    $region25: #{tpu_custom_call.1} parent=1 // pred_fallthru
      _
    %308 = vsyncpa [#allocation3], 1

</llo_original>
